<compile_context>
chip_gen: v6e
topology: v6e:2x2x1
jax: 0.10.0
libtpu: 0.0.40
codegen_flags: <defaults>
</compile_context>

<pallas_src>
import functools

import jax
import jax.numpy as jnp
from jax import lax
from jax.experimental import pallas as pl
from jax.experimental.pallas import tpu as pltpu


def _embed_square_kernel(x_ref, fill_ref, o_ref, *, square_size, tile_h):
    """One grid step = one (1, tile_h, W) block of one channel."""
    c = pl.program_id(0)       # channel index
    hb = pl.program_id(1)      # row-tile index

    xv = x_ref[...]            # (1, tile_h, W)

    # Global row / col coordinates of every element in this block.
    row = lax.broadcasted_iota(jnp.int32, xv.shape, 1) + hb * tile_h
    col = lax.broadcasted_iota(jnp.int32, xv.shape, 2)

    # Elements that belong to the embedded square (only channels 0..2).
    in_square = (row < square_size) & (col < square_size) & (c < 3)

    # Per-channel fill value from SMEM (clamped so c >= 3 never reads OOB).
    fill_c = fill_ref[jnp.minimum(c, 2)]

    o_ref[...] = jnp.where(in_square, fill_c, xv)


def tensor_embed_square(x, fill, pixel_square_size):
    """x: (C, H, W) float; fill: (3,) float; returns x with the square embedded."""
    C, H, W = x.shape
    fill = jnp.asarray(fill, dtype=x.dtype)

    # Pick a row tile: largest multiple-of-8 divisor of H (<= 512), else full H.
    # (Full-extent trailing dims are always legal w.r.t. the (8,128) rule.)
    tile_h = H
    for t in (512, 256, 128, 64, 32, 16, 8):
        if t <= H and H % t == 0:
            tile_h = t
            break

    grid = (C, H // tile_h)

    kernel = functools.partial(
        _embed_square_kernel,
        square_size=int(pixel_square_size),
        tile_h=tile_h,
    )

    return pl.pallas_call(
        kernel,
        out_shape=jax.ShapeDtypeStruct((C, H, W), x.dtype),
        grid=grid,
        in_specs=[
            # x: streamed block-by-block (double buffered by Pallas).
            pl.BlockSpec((1, tile_h, W), lambda c, h: (c, h, 0)),
            # fill: tiny scalar table, resident in SMEM for the whole kernel.
            pl.BlockSpec(memory_space=pltpu.MemorySpace.SMEM),
        ],
        out_specs=pl.BlockSpec((1, tile_h, W), lambda c, h: (c, h, 0)),
        # In-place update semantics of the PyTorch module: alias x -> output.
        input_output_aliases={0: 0},
        compiler_params=pltpu.CompilerParams(
            # Every block is independent -> both grid axes can be sharded
            # across TensorCores on v7x; on v5e/v6e it is just a serial stream.
            dimension_semantics=("parallel", "parallel"),
        ),
    )(x, fill)


if __name__ == "__main__":
    key = jax.random.PRNGKey(0)

    # Small image-like input, CHW (the module indexes x[c, h, w] directly).
    C, H, W = 3, 16, 16
    pixel_square_size = 8
    fill = jnp.array([255.0, 0.0, 128.0], dtype=jnp.float32)

    x = jax.random.uniform(
        key, (C, H, W), dtype=jnp.float32, minval=0.0, maxval=255.0
    )

    # Pure-JAX reference of the (functionalized) in-place fill — computed
    # BEFORE the kernel call since x may be donated via input_output_aliases.
    mask_hw = (
        (jnp.arange(H)[:, None] < pixel_square_size)
        & (jnp.arange(W)[None, :] < pixel_square_size)
    )
    chan_fill = fill[jnp.minimum(jnp.arange(C), 2)][:, None, None]
    chan_mask = (jnp.arange(C) < 3)[:, None, None] & mask_hw[None, :, :]
    ref = jnp.where(chan_mask, chan_fill, x)

    out = tensor_embed_square(x, fill, pixel_square_size)
    out = jax.block_until_ready(out)

    assert out.shape == (C, H, W)
    assert jnp.allclose(out, ref, atol=0.0), "mismatch vs reference"

    print("KERNEL_OK")
</pallas_src>

<mosaic_0001>
module attributes {stable_mosaic.version = 11 : i64} {
  func.func @_embed_square_kernel(%arg0: i32, %arg1: i32, %arg2: memref<1x16x16xf32, #tpu.memory_space<vmem>>, %arg3: memref<3xf32, #tpu.memory_space<smem>>, %arg4: memref<1x16x16xf32, #tpu.memory_space<vmem>>) attributes {dimension_semantics = [#tpu.dimension_semantics<parallel>, #tpu.dimension_semantics<parallel>], iteration_bounds = array<i64: 3, 1>, scalar_prefetch = 0 : i64, scratch_operands = 0 : i64, tpu.core_type = #tpu.core_type<tc>, window_params = [{transform_indices = @transform_0, window_bounds = array<i64: 1, 16, 16>}, {transform_indices = @transform_1, window_bounds = array<i64: 3>}, {transform_indices = @transform_2, window_bounds = array<i64: 1, 16, 16>}]} {
    %c0 = arith.constant 0 : index
    %c0_0 = arith.constant 0 : index
    %c0_1 = arith.constant 0 : index
    %0 = vector.load %arg2[%c0, %c0_0, %c0_1] : memref<1x16x16xf32, #tpu.memory_space<vmem>>, vector<1x16x16xf32>
    %1 = tpu.iota {dimensions = array<i32: 1>} : vector<1x16x16xi32>
    %c16_i32 = arith.constant 16 : i32
    %2 = arith.muli %arg1, %c16_i32 : i32
    %3 = vector.broadcast %2 : i32 to vector<1x16x16xi32>
    %4 = arith.addi %1, %3 : vector<1x16x16xi32>
    %5 = tpu.iota {dimensions = array<i32: 2>} : vector<1x16x16xi32>
    %c8_i32 = arith.constant 8 : i32
    %6 = vector.broadcast %c8_i32 : i32 to vector<1x16x16xi32>
    %7 = arith.cmpi slt, %4, %6 : vector<1x16x16xi32>
    %c8_i32_2 = arith.constant 8 : i32
    %8 = vector.broadcast %c8_i32_2 : i32 to vector<1x16x16xi32>
    %9 = arith.cmpi slt, %5, %8 : vector<1x16x16xi32>
    %10 = arith.andi %7, %9 : vector<1x16x16xi1>
    %c3_i32 = arith.constant 3 : i32
    %11 = arith.cmpi slt, %arg0, %c3_i32 : i32
    %12 = vector.broadcast %11 : i1 to vector<1x16x16xi1>
    %13 = arith.andi %10, %12 : vector<1x16x16xi1>
    %c2_i32 = arith.constant 2 : i32
    %14 = arith.minsi %arg0, %c2_i32 : i32
    %15 = arith.index_cast %14 : i32 to index
    %16 = memref.load %arg3[%15] : memref<3xf32, #tpu.memory_space<smem>>
    %17 = vector.broadcast %16 : f32 to vector<1x16x16xf32>
    %18 = arith.select %13, %17, %0 : vector<1x16x16xi1>, vector<1x16x16xf32>
    %c0_3 = arith.constant 0 : index
    %c0_4 = arith.constant 0 : index
    %c0_5 = arith.constant 0 : index
    %19 = vector.load %arg4[%c0_3, %c0_4, %c0_5] : memref<1x16x16xf32, #tpu.memory_space<vmem>>, vector<1x16x16xf32>
    tpu.vector_store %arg4[%c0_3, %c0_4, %c0_5], %18 {strides = array<i32>} : memref<1x16x16xf32, #tpu.memory_space<vmem>>, vector<1x16x16xf32>,
    return
  }
  func.func @transform_0(%arg0: i32, %arg1: i32) -> (i32, i32, i32) {
    %c0_i32 = arith.constant 0 : i32
    %c0_i32_0 = arith.constant 0 : i32
    return %arg0, %arg1, %c0_i32 : i32, i32, i32
  }
  func.func @transform_1(%arg0: i32, %arg1: i32) -> i32 {
    %c0_i32 = arith.constant 0 : i32
    %c0_i32_0 = arith.constant 0 : i32
    return %c0_i32 : i32
  }
  func.func @transform_2(%arg0: i32, %arg1: i32) -> (i32, i32, i32) {
    %c0_i32 = arith.constant 0 : i32
    %c0_i32_0 = arith.constant 0 : i32
    return %arg0, %arg1, %c0_i32 : i32, i32, i32
  }
}

</mosaic_0001>

<llo_original>
// kernel: tpu_custom_call.1
$region0: #{tpu_custom_call.1}
  #allocation0 [shape = 'u32[]', space=smem, size = 0x4, offset = 0x4, fixed_abs, tag = 'smem constant byte address 0x4 - core index']
  #allocation1 [shape = 'u32[144,128]{1,0:T(1,128)}', space=vmem, size = 0x12000, scoped, tag = 'internal scratch']
  %s0 = inlined_call_operand.hbm [shape: f32[3,16,16], index: 0, kind: input, shape index: {}, may-alias: {0,2}]
  %s1 = inlined_call_operand.vmem [shape: f32[3], index: 1, kind: input, shape index: {}]
  %s2 = inlined_call_operand.hbm [shape: f32[3,16,16], index: 2, kind: output, shape index: {}, may-alias: {0,2}]
  %s3 = sld [smem:[#allocation0]]
  $region49: #{tpu_custom_call.1} parent=0
    _
  %s5 = ssub.s32 1, %s3
  %s6 = scalar_select 0, %s5, %s3
  $region1: #{tpu_custom_call.1} parent=0
    #allocation2 [shape = 'u8[16384]{0}', space=vmem, size = 0x4000, scoped, tag = 'input window, operand 0']
    #allocation3 [shape = 's32[2]{0}', space=sflag, size = 0x8, scoped, tag = 'scoped memory for tpu_custom_call.1']
    #allocation4 [shape = 's32[2]{0}', space=sflag, size = 0x8, scoped, tag = 'scoped memory for tpu_custom_call.1']
    #allocation5 [shape = 's32[2]{0}', space=sflag, size = 0x8, scoped, tag = 'scoped memory for tpu_custom_call.1']
    #allocation6 [shape = 'u8[512]{0}', space=smem, size = 0x200, scoped, tag = 'input window, operand 1, single buffered']
    #allocation7 [shape = 'u8[16384]{0}', space=vmem, size = 0x4000, scoped, tag = 'output window, operand 0']
    %7 = vsyncpa [#allocation3], 0
    %s8 = scalar_lea.sflag [#allocation3], 1
    %9 = vsyncpa %s8, 0
    %10 = vsyncpa [#allocation5], 0
    %11 = vsyncpa [#allocation4], 0
    %s12 = scalar_lea.sflag [#allocation4], 1
    %13 = vsyncpa %s12, 0
    loop: start=0, step=1, limit=5
    $region2: #{tpu_custom_call.1} parent=1 // loop_pre_header
      _
    $region3: #{tpu_custom_call.1} parent=1 // loop_header
      %s15 = sphi 0, %s19
      %p16 = scmp.ge.s32.totalorder %s15, 5
      %s22 = sphi 0, %s34
      %s23 = sphi 0, %s30
      %s24 = sphi 0, %s22
      %s25 = sphi 0, %s23
      %s26 = sphi 0, %s24
      %s27 = sphi 0, %s25
      %s39 = sphi 0, %s41
      %s42 = sphi 0, %s39
      %s43 = sphi 0, %s42
      %s59 = sphi 0, %s43
      %s63 = sphi 0, %s63
      %s65 = sphi 0, %s63
      %s66 = sphi 0, %s65
      %s80 = sphi 0, %s66
      %s88 = sphi 0, %s90
      %s91 = sphi 0, %s88
      %s92 = sphi 0, %s91
      %s108 = sphi 0, %s92
    $region4: #{tpu_custom_call.1} parent=1 // loop_header_branch
      %18 = sbr.rel (%p16) target = $region8
    $region5: #{tpu_custom_call.1} parent=1 // loop_body
      %s20 = ssub.s32 %s15, 1
      %s21 = ssub.s32 %s15, 2
      %s28 = sadd.s32 1, %s23
      %p29 = scmp.ge.s32.totalorder %s28, 1
      %s30 = scalar_select %p29, 0, %s28
      %s31 = sadd.s32 1, %s22
      %s32 = scalar_select %p29, %s31, %s22
      %p33 = scmp.ge.s32.totalorder %s32, 3
      %s34 = scalar_select %p33, 0, %s32
      %s35 = ssub.s32 %s22, %s34
      %s36 = ssub.s32 %s23, %s30
      %s37 = sor.u32 %s35, %s36
      %p38 = scmp.eq.s32.totalorder %s37, 0
      %s40 = sadd.s32 %s39, 1
      %s41 = scalar_select %p38, %s39, %s40
      %p44 = pneg %p38
      %p45 = scmp.eq.s32.totalorder %s15, 2
      %p46 = por %p44, %p45
      %p47 = scmp.ne.s32.totalorder %s39, %s42
      %p48 = scmp.eq.s32.totalorder %s15, 0
      %p49 = por %p47, %p48
      %p50 = scmp.ne.s32.totalorder %s39, %s42
      %p51 = scmp.eq.s32.totalorder %s20, 2
      %p52 = por %p50, %p51
      %p53 = scmp.ne.s32.totalorder %s42, %s43
      %p54 = scmp.eq.s32.totalorder %s20, 0
      %p55 = por %p53, %p54
      %p56 = scmp.ne.s32.totalorder %s42, %s43
      %p57 = scmp.eq.s32.totalorder %s21, 2
      %p58 = por %p56, %p57
      %p60 = scmp.ne.s32.totalorder %s43, %s59
      %p61 = scmp.eq.s32.totalorder %s21, 0
      %p62 = por %p60, %p61
      %s64 = sadd.s32 %s63, 1
      %p67 = scmp.eq.s32.totalorder %s15, 2
      %p68 = scmp.ne.s32.totalorder %s63, %s65
      %p69 = scmp.eq.s32.totalorder %s15, 0
      %p70 = por %p68, %p69
      %p71 = scmp.ne.s32.totalorder %s63, %s65
      %p72 = scmp.eq.s32.totalorder %s20, 2
      %p73 = por %p71, %p72
      %p74 = scmp.ne.s32.totalorder %s65, %s66
      %p75 = scmp.eq.s32.totalorder %s20, 0
      %p76 = por %p74, %p75
      %p77 = scmp.ne.s32.totalorder %s65, %s66
      %p78 = scmp.eq.s32.totalorder %s21, 2
      %p79 = por %p77, %p78
      %p81 = scmp.ne.s32.totalorder %s66, %s80
      %p82 = scmp.eq.s32.totalorder %s21, 0
      %p83 = por %p81, %p82
      %s84 = ssub.s32 %s22, %s34
      %s85 = ssub.s32 %s23, %s30
      %s86 = sor.u32 %s84, %s85
      %p87 = scmp.eq.s32.totalorder %s86, 0
      %s89 = sadd.s32 %s88, 1
      %s90 = scalar_select %p87, %s88, %s89
      %p93 = pneg %p87
      %p94 = scmp.eq.s32.totalorder %s15, 2
      %p95 = por %p93, %p94
      %p96 = scmp.ne.s32.totalorder %s88, %s91
      %p97 = scmp.eq.s32.totalorder %s15, 0
      %p98 = por %p96, %p97
      %p99 = scmp.ne.s32.totalorder %s88, %s91
      %p100 = scmp.eq.s32.totalorder %s20, 2
      %p101 = por %p99, %p100
      %p102 = scmp.ne.s32.totalorder %s91, %s92
      %p103 = scmp.eq.s32.totalorder %s20, 0
      %p104 = por %p102, %p103
      %p105 = scmp.ne.s32.totalorder %s91, %s92
      %p106 = scmp.eq.s32.totalorder %s21, 2
      %p107 = por %p105, %p106
      %p109 = scmp.ne.s32.totalorder %s92, %s108
      %p110 = scmp.eq.s32.totalorder %s21, 0
      %p111 = por %p109, %p110
      %p112 = scmp.le.s32.totalorder 1, %s15
      %p113 = scmp.lt.s32.totalorder %s15, 4
      %p114 = pnand %p112, %p113
      %p115 = pneg %p114
      // Predicated region
      $region9: #{tpu_custom_call.1} parent=5 // pred_check
        _
      $region10: #{tpu_custom_call.1} parent=5 // pred_check_branch
        %117 = sbr.rel (%p114) target = $region12
      $region11: #{tpu_custom_call.1} parent=5 // pred_region
        %s118 = ssub.s32 %s15, 1
        // Predicated region
        $region13: #{tpu_custom_call.1} parent=11 // pred_check
          %p119 = pneg %p76
        $region14: #{tpu_custom_call.1} parent=11 // pred_check_branch
          %121 = sbr.rel (%p119) target = $region16
        $region15: #{tpu_custom_call.1} parent=11 // pred_region
          %s123 = ssub.s32 16, 16
          %124 = vsyncadd [#allocation5], %s123
          %s126 = sshll.u32 %s1, 4
          %s127 = int_to_ptr.vmem [resolvable:$true] %s126
          %129 = dma.vmem_to_smem %s127, 16, [#allocation6], [#allocation5]
        $region16: #{tpu_custom_call.1} parent=11 // pred_fallthru
          _
      $region12: #{tpu_custom_call.1} parent=5 // pred_fallthru
        _
      %p130 = scmp.lt.s32.totalorder %s15, 3
      // Predicated region
      $region17: #{tpu_custom_call.1} parent=5 // pred_check
        %p131 = pneg %p130
      $region18: #{tpu_custom_call.1} parent=5 // pred_check_branch
        %133 = sbr.rel (%p131) target = $region20
      $region19: #{tpu_custom_call.1} parent=5 // pred_region
        // Predicated region
        $region21: #{tpu_custom_call.1} parent=19 // pred_check
          %p134 = pneg %p49
        $region22: #{tpu_custom_call.1} parent=19 // pred_check_branch
          %136 = sbr.rel (%p134) target = $region24
        $region23: #{tpu_custom_call.1} parent=19 // pred_region
          %s137 = sand.u32 %s39, 1
          %s138 = scalar_lea.sflag [#allocation3], %s137
          %s139 = sand.u32 %s39, 1
          %s140 = smul.addr %s139, 16
          %s141 = scalar_lea.vmem [#allocation2], %s140
          %s142 = smul.u32 2, %s23
          %s144 = ssub.s32 256, 256
          %145 = vsyncadd %s138, %s144
          %s146 = smul.addr %s22, 2
          %s147 = sadd.s32 %s142, %s146
          %s148 = smul.addr %s147, 128
          %s149 = scalar_lea.hbm %s0, %s148
          %s150 = sshll.u32 %s141, 4
          %s151 = int_to_ptr.vmem [resolvable:$true] %s150
          %156 = dma.hbm_to_vmem [thread:$0]  %s149, 256, %s151, %s138, 128, 128, 8
        $region24: #{tpu_custom_call.1} parent=19 // pred_fallthru
          _
      $region20: #{tpu_custom_call.1} parent=5 // pred_fallthru
        _
      %p157 = scmp.le.s32.totalorder 1, %s15
      %p158 = scmp.lt.s32.totalorder %s15, 4
      %p159 = pnand %p157, %p158
      %p160 = pneg %p159
      // Predicated region
      $region25: #{tpu_custom_call.1} parent=5 // pred_check
        _
      $region26: #{tpu_custom_call.1} parent=5 // pred_check_branch
        %162 = sbr.rel (%p159) target = $region28
      $region27: #{tpu_custom_call.1} parent=5 // pred_region
        %s163 = ssub.s32 %s15, 1
        %s164 = sand.u32 %s42, 1
        %s165 = scalar_lea.sflag [#allocation3], %s164
        %s166 = sand.u32 %s42, 1
        %s167 = smul.addr %s166, 16
        %s168 = scalar_lea.vmem [#allocation2], %s167
        // Predicated region
        $region29: #{tpu_custom_call.1} parent=27 // pred_check
          %p169 = pneg %p55
        $region30: #{tpu_custom_call.1} parent=27 // pred_check_branch
          %171 = sbr.rel (%p169) target = $region32
        $region31: #{tpu_custom_call.1} parent=27 // pred_region
          %172 = dma.done %s165, 256
        $region32: #{tpu_custom_call.1} parent=27 // pred_fallthru
          _
        // Predicated region
        $region33: #{tpu_custom_call.1} parent=27 // pred_check
          %p173 = pneg %p76
        $region34: #{tpu_custom_call.1} parent=27 // pred_check_branch
          %175 = sbr.rel (%p173) target = $region36
        $region35: #{tpu_custom_call.1} parent=27 // pred_region
          %176 = dma.done [#allocation5], 16
        $region36: #{tpu_custom_call.1} parent=27 // pred_fallthru
          _
        %177 = sfence
        %s178 = sand.u32 %s42, 1
        %s179 = scalar_lea.sflag [#allocation3], %s178
        %s180 = sand.u32 %s42, 1
        %s181 = smul.addr %s180, 16
        %s182 = scalar_lea.vmem [#allocation2], %s181
        %p183 = pneg %p55
        %p184 = pneg %p52
        %p185 = pneg %p76
        %p186 = pneg %p73
        %p187 = pneg %p104
        %p188 = pneg %p101
        %s189 = sand.u32 %s91, 1
        %s190 = scalar_lea.sflag [#allocation4], %s189
        %s191 = sand.u32 %s91, 1
        %s192 = smul.addr %s191, 16
        %s193 = scalar_lea.vmem [#allocation7], %s192
        %s194 = smul.u32 2, %s25
        %s195 = smul.u32 2, %s25
        %v196 = vld [vmem:[%s168] sm:$0xff]
        %v197 = vld [vmem:[%s168 + $0x8] sm:$0xff]
        %v198 = vlaneseq
        %v199 = vshrl.u32 %v198, 7
        %v200 = vadd.s32 %v199, 8
        %s201 = smul.u32 %s25, 16
        %v202 = vstv %s201
        %v203 = vadd.s32 %v199, %v202
        %v204 = vadd.s32 %v200, %v202
        %v205 = vlaneseq
        %v206 = vand.u32 %v205, 127
        %vm207 = vcmp.lt.s32.totalorder %v203, 8
        %vm208 = vcmp.lt.s32.totalorder %v204, 8
        %vm209 = vcmp.lt.s32.totalorder %v206, 8
        %vm210 = vmand %vm207, %vm209
        %vm211 = vmand %vm208, %vm209
        %p212 = scmp.lt.s32.totalorder %s24, 3
        %s213 = scalar_select %p212, 1, 0
        %v214 = vstv %s213
        %vm215 = vcmp.eq.s32.totalorder %v214, 1
        %vm216 = vmand %vm210, %vm215
        %vm217 = vmand %vm211, %vm215
        %p218 = scmp.lt.s32.totalorder %s24, 2
        %s219 = scalar_select %p218, %s24, 2
        %s220 = sld [smem:[#allocation6 + %s219]]
        %v221 = vstv %s220
        %v222 = vsel %vm216, %v221, %v196
        %v223 = vsel %vm217, %v221, %v197
        %vm224 = vcmask 130048
        %225 = vst.msk [vmem:[%s193] sm:$0xff] %vm224, %v222
        %226 = vst.msk [vmem:[%s193 + $0x8] sm:$0xff] %vm224, %v223
        %s227 = sand.u32 %s91, 1
        %s228 = scalar_lea.sflag [#allocation4], %s227
        %s229 = sand.u32 %s91, 1
        %s230 = smul.addr %s229, 16
        %s231 = scalar_lea.vmem [#allocation7], %s230
        // Predicated region
        $region37: #{tpu_custom_call.1} parent=27 // pred_check
          %p232 = pneg %p101
        $region38: #{tpu_custom_call.1} parent=27 // pred_check_branch
          %234 = sbr.rel (%p232) target = $region40
        $region39: #{tpu_custom_call.1} parent=27 // pred_region
          %s235 = smul.u32 2, %s25
          %s237 = ssub.s32 256, 256
          %238 = vsyncadd %s228, %s237
          %s239 = smul.addr %s24, 2
          %s240 = sadd.s32 %s235, %s239
          %s241 = smul.addr %s240, 128
          %s242 = scalar_lea.hbm %s2, %s241
          %s243 = sshll.u32 %s231, 4
          %s244 = int_to_ptr.vmem [resolvable:$true] %s243
          %249 = dma.vmem_to_hbm [thread:$0]  %s244, 256, %s242, %s228, 128, 128, 8
        $region40: #{tpu_custom_call.1} parent=27 // pred_fallthru
          _
      $region28: #{tpu_custom_call.1} parent=5 // pred_fallthru
        _
      %p250 = scmp.le.s32.totalorder 2, %s15
      // Predicated region
      $region41: #{tpu_custom_call.1} parent=5 // pred_check
        %p251 = pneg %p250
      $region42: #{tpu_custom_call.1} parent=5 // pred_check_branch
        %253 = sbr.rel (%p251) target = $region44
      $region43: #{tpu_custom_call.1} parent=5 // pred_region
        %s254 = ssub.s32 %s15, 2
        // Predicated region
        $region45: #{tpu_custom_call.1} parent=43 // pred_check
          %p255 = pneg %p107
        $region46: #{tpu_custom_call.1} parent=43 // pred_check_branch
          %257 = sbr.rel (%p255) target = $region48
        $region47: #{tpu_custom_call.1} parent=43 // pred_region
          %s258 = sand.u32 %s92, 1
          %s259 = scalar_lea.sflag [#allocation4], %s258
          %s260 = sand.u32 %s92, 1
          %s261 = smul.addr %s260, 16
          %s262 = scalar_lea.vmem [#allocation7], %s261
          %263 = dma.done %s259, 256
        $region48: #{tpu_custom_call.1} parent=43 // pred_fallthru
          _
      $region44: #{tpu_custom_call.1} parent=5 // pred_fallthru
        _
    $region6: #{tpu_custom_call.1} parent=1 // loop_footer
      %s19 = sadd.s32 1, %s15
    $region7: #{tpu_custom_call.1} parent=1 // loop_footer_branch
      %14 = sbr.rel target = $region3
    $region8: #{tpu_custom_call.1} parent=1 // loop_exit
      _
    %264 = vsyncpa [#allocation3], 1
    %s265 = scalar_lea.sflag [#allocation3], 1
    %266 = vsyncpa %s265, 1
    %267 = vsyncpa [#allocation4], 1
    %s268 = scalar_lea.sflag [#allocation4], 1
    %269 = vsyncpa %s268, 1
    %270 = vsyncpa [#allocation5], 1
    %s271 = scalar_lea.sflag [#allocation5], 1
    %272 = vsyncpa %s271, 1

</llo_original>
